<compile_context>
chip_gen: v5e
topology: v5e:2x2
jax: 0.10.0
libtpu: 0.0.40
codegen_flags: <defaults>
</compile_context>

<pallas_src>
import functools

import jax
import jax.numpy as jnp
from jax import lax
from jax.experimental import pallas as pl
from jax.experimental.pallas import tpu as pltpu

_MIB = 1024 * 1024


def _round_up(x, m):
    return (x + m - 1) // m * m


# ----------------------------------------------------------------------------
# Generation-aware tuning (done once, at import, outside any jit)
# ----------------------------------------------------------------------------
def _detect_chip():
    """Return (vmem_limit_bytes, pipeline_budget_bytes, n_tensorcores, fc_tn)."""
    kind = ""
    try:
        kind = jax.devices()[0].device_kind.lower()
    except Exception:
        pass
    vmem_cap = None
    try:
        vmem_cap = int(pltpu.get_tpu_info().vmem_capacity_bytes)
    except Exception:
        vmem_cap = None
    if vmem_cap is None:
        if "v7" in kind or "7x" in kind:
            vmem_cap = 64 * _MIB
        elif "v5" in kind or "v6" in kind:
            vmem_cap = 128 * _MIB
        else:
            vmem_cap = 64 * _MIB                      # conservative default

    if vmem_cap >= 100 * _MIB:
        # v5e / v6e: raise the scoped limit well above the 16/32 MiB defaults
        # and use wide lane-dense FC tiles (fewer, larger weight DMAs).
        vmem_limit, budget, fc_tn = 100 * _MIB, 80 * _MIB, 1024
    else:
        # v7x (64 MiB physical): stay under the 32 MiB scoped default.
        vmem_limit, budget, fc_tn = 32 * _MIB, 26 * _MIB, 512
    n_cores = 2 if ("v7" in kind or "7x" in kind) else 1
    return vmem_limit, budget, n_cores, fc_tn


_VMEM_LIMIT, _VMEM_BUDGET, _N_CORES, _FC_TN = _detect_chip()


# ----------------------------------------------------------------------------
# Pallas kernels: matmul with fused bias add and optional ReLU
# ----------------------------------------------------------------------------
def _mm_bias_kernel(x_ref, w_ref, b_ref, o_ref, *, relu):
    """Full-K block: single pass, no accumulation phase needed."""
    out = jnp.dot(x_ref[...], w_ref[...], preferred_element_type=jnp.float32)
    out = out + b_ref[...]
    if relu:
        out = jnp.maximum(out, 0.0)
    o_ref[...] = out.astype(o_ref.dtype)


def _mm_bias_acc_kernel(x_ref, w_ref, b_ref, o_ref, acc_ref, *, relu):
    """Split-K fallback: f32 scratch accumulator, bias/ReLU fused on last step."""
    @pl.when(pl.program_id(2) == 0)
    def _():
        acc_ref[...] = jnp.zeros_like(acc_ref)

    acc_ref[...] += jnp.dot(x_ref[...], w_ref[...],
                            preferred_element_type=jnp.float32)

    @pl.when(pl.program_id(2) == pl.num_programs(2) - 1)
    def _():
        out = acc_ref[...] + b_ref[...]
        if relu:
            out = jnp.maximum(out, 0.0)
        o_ref[...] = out.astype(o_ref.dtype)


def _pipeline_bytes(tm, tk, tn):
    # double-buffered bf16 x/w blocks + f32 bias block + worst-case f32 output
    return 2 * (tm * tk * 2 + tk * tn * 2 + tn * 4 + tm * tn * 4)


def pallas_linear(x, wp, bp, n_out, *, relu=False, out_dtype=jnp.float32):
    """y = x @ w + b (optionally ReLU) on the MXU.

    x     : (M, K) f32 or bf16 activations (un-padded).
    wp    : (Kp, Np) bf16 weight, pre-padded to multiples of 128.
    bp    : (1, Np)  f32 bias, pre-padded.
    n_out : original N; result is sliced back to (M, n_out) in out_dtype.
    """
    M, K = x.shape
    Kp, Np = wp.shape

    # --- N tiling: large lane-dense output tiles; keep grid-N >= 2 on
    # multi-TensorCore chips so both cores get work. ---
    tn_max = _FC_TN
    if _N_CORES >= 2 and Np >= 256:
        tn_max = min(tn_max, Np // 2)
    tn = 128
    for cand in range(Np, 127, -128):         # Np is a multiple of 128
        if cand <= tn_max and Np % cand == 0:
            tn = cand
            break

    # --- M tiling (bf16 operands => sublane multiples of 16) ---
    if M <= 512:
        tm = _round_up(M, 16)
        if _N_CORES >= 2 and Np // tn == 1 and tm >= 256:
            # N axis is a single tile: split M instead so grid extent >= 2.
            tm = _round_up(-(-M // 2), 16)
            Mp = 2 * tm
        else:
            Mp = tm
    else:
        tm = 256
        Mp = _round_up(M, tm)

    # --- K tiling: single full-K block whenever it fits the VMEM budget ---
    kb = Kp // 128
    nk = kb
    for cand in range(1, kb + 1):
        if kb % cand:
            continue
        if _pipeline_bytes(tm, (kb // cand) * 128, tn) <= _VMEM_BUDGET:
            nk = cand
            break
    tk = (kb // nk) * 128

    xp = jnp.pad(x, ((0, Mp - M), (0, Kp - K))).astype(jnp.bfloat16)

    if nk == 1:
        grid = (Mp // tm, Np // tn)
        kernel = functools.partial(_mm_bias_kernel, relu=relu)
        in_specs = [
            pl.BlockSpec((tm, Kp), lambda i, j: (i, 0)),
            pl.BlockSpec((Kp, tn), lambda i, j: (0, j)),
            pl.BlockSpec((1, tn), lambda i, j: (0, j)),
        ]
        out_spec = pl.BlockSpec((tm, tn), lambda i, j: (i, j))
        scratch = []
        dim_sem = ("parallel", "parallel")
    else:
        grid = (Mp // tm, Np // tn, nk)
        kernel = functools.partial(_mm_bias_acc_kernel, relu=relu)
        in_specs = [
            pl.BlockSpec((tm, tk), lambda i, j, k: (i, k)),
            pl.BlockSpec((tk, tn), lambda i, j, k: (k, j)),
            pl.BlockSpec((1, tn), lambda i, j, k: (0, j)),
        ]
        out_spec = pl.BlockSpec((tm, tn), lambda i, j, k: (i, j))
        scratch = [pltpu.VMEM((tm, tn), jnp.float32)]
        dim_sem = ("parallel", "parallel", "arbitrary")

    out = pl.pallas_call(
        kernel,
        out_shape=jax.ShapeDtypeStruct((Mp, Np), out_dtype),
        grid_spec=pltpu.PrefetchScalarGridSpec(
            num_scalar_prefetch=0,
            grid=grid,
            in_specs=in_specs,
            out_specs=out_spec,
            scratch_shapes=scratch,
        ),
        compiler_params=pltpu.CompilerParams(
            dimension_semantics=dim_sem,
            vmem_limit_bytes=_VMEM_LIMIT,
        ),
    )(xp, wp, bp)
    return out[:M, :n_out]


# ----------------------------------------------------------------------------
# Conv / pool building blocks (NHWC activations end-to-end)
# ----------------------------------------------------------------------------
def conv2d(x, wmat, b, *, out_ch, ksize, stride, padding, relu,
           out_dtype=jnp.bfloat16):
    """NHWC conv via im2col + Pallas GEMM.

    x    : (N, H, W, C)
    wmat : (Kp, Np) bf16 pre-padded GEMM weight, K = C*kh*kw channel-major
           (conv_general_dilated_patches' feature ordering is (c, kh, kw)
           regardless of data layout, matching w.reshape(O, -1).T).
    """
    N = x.shape[0]
    patches = lax.conv_general_dilated_patches(
        x, (ksize, ksize), (stride, stride),
        [(padding, padding), (padding, padding)],
        dimension_numbers=("NHWC", "HWIO", "NHWC"))
    _, Ho, Wo, K = patches.shape                      # feature dim is last
    cols = patches.reshape(N * Ho * Wo, K)            # no transpose needed
    out = pallas_linear(cols, wmat, b, out_ch, relu=relu, out_dtype=out_dtype)
    return out.reshape(N, Ho, Wo, out_ch)


def max_pool2d(x, k=3, s=2):
    # TODO(synk): pooling kept in plain JAX (cheap glue, not the hot path).
    neg_inf = jnp.array(-jnp.inf, dtype=x.dtype)
    return lax.reduce_window(x, neg_inf, lax.max,
                             (1, k, k, 1), (1, s, s, 1), "VALID")


def adaptive_avg_pool2d(x, out_h, out_w):
    """PyTorch AdaptiveAvgPool2d semantics on NHWC input (vectorized paths)."""
    N, H, W, C = x.shape
    if H == out_h and W == out_w:
        return x
    if out_h % H == 0 and out_w % W == 0:
        # Every output bin covers exactly one input element (for this model
        # H == W == 1, so this is a pure broadcast to 6x6).
        x = jnp.repeat(x, out_h // H, axis=1)
        return jnp.repeat(x, out_w // W, axis=2)
    if H % out_h == 0 and W % out_w == 0:
        fh, fw = H // out_h, W // out_w
        x = x.reshape(N, out_h, fh, out_w, fw, C)
        return x.mean(axis=(2, 4), dtype=jnp.float32).astype(x.dtype)
    # TODO(synk): general non-divisible adaptive pooling kept as a small
    # fallback loop; never hit by this pipeline.
    rows = []
    for i in range(out_h):
        hs, he = (i * H) // out_h, -(-((i + 1) * H) // out_h)
        cols = []
        for j in range(out_w):
            ws, we = (j * W) // out_w, -(-((j + 1) * W) // out_w)
            cols.append(jnp.mean(x[:, hs:he, ws:we, :], axis=(1, 2)))
        rows.append(jnp.stack(cols, axis=1))
    return jnp.stack(rows, axis=1).astype(x.dtype)


# ----------------------------------------------------------------------------
# CatNet / AlexNet parameters (deterministic synthetic init) and forward pass
# ----------------------------------------------------------------------------
def init_params(key):
    shapes = {
        # AlexNet features
        "conv1_w": (64, 3, 11, 11), "conv1_b": (64,),
        "conv2_w": (192, 64, 5, 5), "conv2_b": (192,),
        "conv3_w": (384, 192, 3, 3), "conv3_b": (384,),
        "conv4_w": (256, 384, 3, 3), "conv4_b": (256,),
        "conv5_w": (256, 256, 3, 3), "conv5_b": (256,),
        # AlexNet classifier (Linear weights stored as (in, out))
        "fc1_w": (256 * 6 * 6, 4096), "fc1_b": (4096,),
        "fc2_w": (4096, 4096), "fc2_b": (4096,),
        "fc3_w": (4096, 1000), "fc3_b": (1000,),
    }
    params = {}
    keys = jax.random.split(key, len(shapes))
    for k, (name, shp) in zip(keys, sorted(shapes.items())):
        params[name] = (0.02 * jax.random.normal(k, shp)).astype(jnp.float32)
    return params


def prepare_params(raw, *, fc1_cnn_chw=(256, 6, 6)):
    """One-time weight prep (outside the jitted forward): reshape conv kernels
    to GEMM layout, permute fc1 rows to NHWC-flatten order, pad K/N to
    multiples of 128, cast weights to bf16, biases to (1, Np) f32."""
    prep = {}
    for name, val in raw.items():
        if name.endswith("_w"):
            if val.ndim == 4:                       # conv (O,C,kh,kw) -> (C*kh*kw, O)
                w2 = val.reshape(val.shape[0], -1).T
            else:                                   # linear, already (K, N)
                w2 = val
                if name == "fc1_w":
                    # torch flattens NCHW (c,h,w)-major; our activations are
                    # NHWC, so permute fc1 rows once to (h,w,c)-major.
                    C, Hs, Ws = fc1_cnn_chw
                    w2 = (w2.reshape(C, Hs, Ws, -1)
                             .transpose(1, 2, 0, 3)
                             .reshape(C * Hs * Ws, -1))
            K, N = w2.shape
            Kp, Np = _round_up(K, 128), _round_up(N, 128)
            prep[name] = jnp.pad(
                w2, ((0, Kp - K), (0, Np - N))).astype(jnp.bfloat16)
        else:                                       # bias -> (1, Np) f32
            N = val.shape[0]
            Np = _round_up(N, 128)
            prep[name] = jnp.pad(val, ((0, Np - N),)).reshape(1, Np).astype(
                jnp.float32)
    return prep


@jax.jit
def catnet_forward(params, x):
    p = params
    # PyTorch-style NCHW input -> NHWC once; everything downstream is NHWC
    # with bf16 activations between layers.
    x = x.transpose(0, 2, 3, 1)
    # --- self.cnn : alexnet.features + avgpool ---
    x = conv2d(x, p["conv1_w"], p["conv1_b"], out_ch=64, ksize=11,
               stride=4, padding=2, relu=True)
    x = max_pool2d(x, 3, 2)
    x = conv2d(x, p["conv2_w"], p["conv2_b"], out_ch=192, ksize=5,
               stride=1, padding=2, relu=True)
    x = max_pool2d(x, 3, 2)
    x = conv2d(x, p["conv3_w"], p["conv3_b"], out_ch=384, ksize=3,
               stride=1, padding=1, relu=True)
    x = conv2d(x, p["conv4_w"], p["conv4_b"], out_ch=256, ksize=3,
               stride=1, padding=1, relu=True)
    x = conv2d(x, p["conv5_w"], p["conv5_b"], out_ch=256, ksize=3,
               stride=1, padding=1, relu=True)
    x = max_pool2d(x, 3, 2)
    x = adaptive_avg_pool2d(x, 6, 6)
    # --- torch.flatten(x, 1) (fc1 weight rows are pre-permuted for NHWC) ---
    x = x.reshape(x.shape[0], -1)                    # (N, 6*6*256)
    # --- self.classifier : Dropout (eval identity) / Linear+ReLU x2 / Linear ---
    x = pallas_linear(x, p["fc1_w"], p["fc1_b"], 4096, relu=True,
                      out_dtype=jnp.bfloat16)
    x = pallas_linear(x, p["fc2_w"], p["fc2_b"], 4096, relu=True,
                      out_dtype=jnp.bfloat16)
    x = pallas_linear(x, p["fc3_w"], p["fc3_b"], 1000, relu=False,
                      out_dtype=jnp.float32)
    return x


if __name__ == "__main__":
    key = jax.random.PRNGKey(0)
    kx, kp, kc = jax.random.split(key, 3)

    # --- tiny sanity check: im2col feature ordering vs. lax.conv reference ---
    wc = 0.1 * jax.random.normal(kc, (8, 4, 3, 3), dtype=jnp.float32)
    xc = jax.random.normal(kx, (2, 8, 8, 4), dtype=jnp.float32)
    wc_gemm = jnp.pad(wc.reshape(8, -1).T,
                      ((0, 128 - 36), (0, 128 - 8))).astype(jnp.bfloat16)
    bc_gemm = jnp.zeros((1, 128), jnp.float32)
    got = conv2d(xc, wc_gemm, bc_gemm, out_ch=8, ksize=3, stride=1,
                 padding=1, relu=False, out_dtype=jnp.float32)
    ref = lax.conv_general_dilated(
        xc, wc.transpose(2, 3, 1, 0), (1, 1), [(1, 1), (1, 1)],
        dimension_numbers=("NHWC", "HWIO", "NHWC"))
    assert jnp.allclose(got, ref, atol=5e-2, rtol=5e-2), "im2col ordering mismatch"

    # --- full CatNet (AlexNet backbone) forward ---
    x = jax.random.normal(kx, (2, 3, 64, 64), dtype=jnp.float32)
    params = prepare_params(init_params(kp))

    y = catnet_forward(params, x)
    y = jax.block_until_ready(y)
    assert y.shape == (2, 1000), y.shape
    assert jnp.all(jnp.isfinite(y))
    print("KERNEL_OK")
</pallas_src>

<mosaic_0001>
module attributes {stable_mosaic.version = 11 : i64} {
  func.func @_mm_bias_kernel(%arg0: i32, %arg1: i32, %arg2: memref<128x128xbf16, #tpu.memory_space<vmem>>, %arg3: memref<128x128xbf16, #tpu.memory_space<vmem>>, %arg4: memref<1x128xf32, #tpu.memory_space<vmem>>, %arg5: memref<128x128xf32, #tpu.memory_space<vmem>>) attributes {dimension_semantics = [#tpu.dimension_semantics<parallel>, #tpu.dimension_semantics<parallel>], iteration_bounds = array<i64: 1, 1>, scalar_prefetch = 0 : i64, scratch_operands = 0 : i64, tpu.core_type = #tpu.core_type<tc>, window_params = [{transform_indices = @transform_0, window_bounds = array<i64: 128, 128>}, {transform_indices = @transform_1, window_bounds = array<i64: 128, 128>}, {transform_indices = @transform_2, window_bounds = array<i64: 1, 128>}, {transform_indices = @transform_3, window_bounds = array<i64: 128, 128>}]} {
    %c0 = arith.constant 0 : index
    %c0_0 = arith.constant 0 : index
    %0 = vector.load %arg2[%c0, %c0_0] : memref<128x128xbf16, #tpu.memory_space<vmem>>, vector<128x128xbf16>
    %c0_1 = arith.constant 0 : index
    %c0_2 = arith.constant 0 : index
    %1 = vector.load %arg3[%c0_1, %c0_2] : memref<128x128xbf16, #tpu.memory_space<vmem>>, vector<128x128xbf16>
    %cst = arith.constant dense<0.000000e+00> : vector<128x128xf32>
    %2 = tpu.matmul %0, %1, %cst {dimension_numbers = #tpu.dot_dimension_numbers<[1], [0], [0], [1], [0, 0, 1, 1], [], []>} : vector<128x128xbf16>, vector<128x128xbf16>, vector<128x128xf32> -> vector<128x128xf32>
    %c0_3 = arith.constant 0 : index
    %c0_4 = arith.constant 0 : index
    %3 = vector.load %arg4[%c0_3, %c0_4] : memref<1x128xf32, #tpu.memory_space<vmem>>, vector<1x128xf32>
    %4 = vector.broadcast %3 : vector<1x128xf32> to vector<128x128xf32>
    %5 = arith.addf %2, %4 : vector<128x128xf32>
    %c0_5 = arith.constant 0 : index
    %c0_6 = arith.constant 0 : index
    %6 = vector.load %arg5[%c0_5, %c0_6] : memref<128x128xf32, #tpu.memory_space<vmem>>, vector<128x128xf32>
    tpu.vector_store %arg5[%c0_5, %c0_6], %5 {strides = array<i32>} : memref<128x128xf32, #tpu.memory_space<vmem>>, vector<128x128xf32>,
    return
  }
  func.func @transform_0(%arg0: i32, %arg1: i32) -> (i32, i32) {
    %c0_i32 = arith.constant 0 : i32
    %c0_i32_0 = arith.constant 0 : i32
    return %arg0, %c0_i32 : i32, i32
  }
  func.func @transform_1(%arg0: i32, %arg1: i32) -> (i32, i32) {
    %c0_i32 = arith.constant 0 : i32
    %c0_i32_0 = arith.constant 0 : i32
    return %c0_i32, %arg1 : i32, i32
  }
  func.func @transform_2(%arg0: i32, %arg1: i32) -> (i32, i32) {
    %c0_i32 = arith.constant 0 : i32
    %c0_i32_0 = arith.constant 0 : i32
    return %c0_i32, %arg1 : i32, i32
  }
  func.func @transform_3(%arg0: i32, %arg1: i32) -> (i32, i32) {
    %c0_i32 = arith.constant 0 : i32
    return %arg0, %arg1 : i32, i32
  }
}

</mosaic_0001>

<llo_original>
// kernel: tpu_custom_call.1
$region0: #{tpu_custom_call.1}
  #allocation0 [shape = 'u32[]', space=smem, size = 0x4, offset = 0x4, fixed_abs, tag = 'smem constant byte address 0x4 - core index']
  #allocation1 [shape = 'u32[72,128]{1,0:T(1,128)}', space=vmem, size = 0x9000, scoped, tag = 'internal scratch']
  %s0 = inlined_call_operand.hbm [shape: bf16[128,128], index: 0, kind: input, shape index: {}]
  %s1 = inlined_call_operand.hbm [shape: bf16[128,128], index: 1, kind: input, shape index: {}]
  %s2 = inlined_call_operand.vmem [shape: f32[1,128], index: 2, kind: input, shape index: {}]
  %s3 = inlined_call_operand.hbm [shape: f32[128,128], index: 3, kind: output, shape index: {}]
  %s4 = sld [smem:[#allocation0]]
  $region30: #{tpu_custom_call.1} parent=0
    _
  %s6 = ssub.s32 1, %s4
  %s7 = scalar_select 0, %s6, %s4
  $region1: #{tpu_custom_call.1} parent=0
    #allocation2 [shape = 'u8[32768]{0}', space=vmem, size = 0x8000, scoped, tag = 'input window, operand 0, single buffered']
    #allocation3 [shape = 's32[1]{0}', space=sflag, size = 0x4, scoped, tag = 'scoped memory for tpu_custom_call.1']
    #allocation4 [shape = 's32[1]{0}', space=sflag, size = 0x4, scoped, tag = 'scoped memory for tpu_custom_call.1']
    #allocation5 [shape = 'u8[32768]{0}', space=vmem, size = 0x8000, scoped, tag = 'input window, operand 1, single buffered']
    #allocation6 [shape = 's32[1]{0}', space=sflag, size = 0x4, scoped, tag = 'scoped memory for tpu_custom_call.1']
    #allocation7 [shape = 'u8[65536]{0}', space=vmem, size = 0x10000, scoped, tag = 'output window, operand 0, single buffered']
    %8 = vsyncpa [#allocation3], 0
    %9 = vsyncpa [#allocation6], 0
    %10 = vsyncpa [#allocation4], 0
    // Predicated region
    $region2: #{tpu_custom_call.1} parent=1 // pred_check
      _
    $region3: #{tpu_custom_call.1} parent=1 // pred_check_branch
      %12 = sbr.rel (0) target = $region5
    $region4: #{tpu_custom_call.1} parent=1 // pred_region
      %14 = vsyncadd [#allocation3], 0
      %s15 = sshll.u32 %s0, 4
      %s16 = int_to_ptr.hbm [resolvable:$true] %s15
      %s17 = sshll.u32 [#allocation2], 4
      %s18 = int_to_ptr.vmem [resolvable:$true] %s17
      %23 = dma.hbm_to_vmem [thread:$0]  %s16, 1024, %s18, [#allocation3], 64, 64, 4
    $region5: #{tpu_custom_call.1} parent=1 // pred_fallthru
      _
    // Predicated region
    $region6: #{tpu_custom_call.1} parent=1 // pred_check
      _
    $region7: #{tpu_custom_call.1} parent=1 // pred_check_branch
      %25 = sbr.rel (0) target = $region9
    $region8: #{tpu_custom_call.1} parent=1 // pred_region
      %27 = vsyncadd [#allocation6], 0
      %s28 = sshll.u32 %s1, 4
      %s29 = int_to_ptr.hbm [resolvable:$true] %s28
      %s30 = sshll.u32 [#allocation5], 4
      %s31 = int_to_ptr.vmem [resolvable:$true] %s30
      %36 = dma.hbm_to_vmem [thread:$0]  %s29, 1024, %s31, [#allocation6], 64, 64, 4
    $region9: #{tpu_custom_call.1} parent=1 // pred_fallthru
      _
    // Predicated region
    $region10: #{tpu_custom_call.1} parent=1 // pred_check
      _
    $region11: #{tpu_custom_call.1} parent=1 // pred_check_branch
      %38 = sbr.rel (0) target = $region13
    $region12: #{tpu_custom_call.1} parent=1 // pred_region
      _
    $region13: #{tpu_custom_call.1} parent=1 // pred_fallthru
      _
    // Predicated region
    $region14: #{tpu_custom_call.1} parent=1 // pred_check
      _
    $region15: #{tpu_custom_call.1} parent=1 // pred_check_branch
      %40 = sbr.rel (0) target = $region17
    $region16: #{tpu_custom_call.1} parent=1 // pred_region
      %42 = dma.done [#allocation3], 1024
    $region17: #{tpu_custom_call.1} parent=1 // pred_fallthru
      _
    // Predicated region
    $region18: #{tpu_custom_call.1} parent=1 // pred_check
      _
    $region19: #{tpu_custom_call.1} parent=1 // pred_check_branch
      %44 = sbr.rel (0) target = $region21
    $region20: #{tpu_custom_call.1} parent=1 // pred_region
      %46 = dma.done [#allocation6], 1024
    $region21: #{tpu_custom_call.1} parent=1 // pred_fallthru
      _
    %v47 = vld [vmem:[#allocation2] sm:$0xf]
    %v48 = vld [vmem:[#allocation2 + $0x4] sm:$0xf]
    %v49 = vld [vmem:[#allocation2 + $0x8] sm:$0xf]
    %v50 = vld [vmem:[#allocation2 + $0xc] sm:$0xf]
    %v51 = vld [vmem:[#allocation2 + $0x10] sm:$0xf]
    %v52 = vld [vmem:[#allocation2 + $0x14] sm:$0xf]
    %v53 = vld [vmem:[#allocation2 + $0x18] sm:$0xf]
    %v54 = vld [vmem:[#allocation2 + $0x1c] sm:$0xf]
    %v55 = vld [vmem:[#allocation2 + $0x20] sm:$0xf]
    %v56 = vld [vmem:[#allocation2 + $0x24] sm:$0xf]
    %v57 = vld [vmem:[#allocation2 + $0x28] sm:$0xf]
    %v58 = vld [vmem:[#allocation2 + $0x2c] sm:$0xf]
    %v59 = vld [vmem:[#allocation2 + $0x30] sm:$0xf]
    %v60 = vld [vmem:[#allocation2 + $0x34] sm:$0xf]
    %v61 = vld [vmem:[#allocation2 + $0x38] sm:$0xf]
    %v62 = vld [vmem:[#allocation2 + $0x3c] sm:$0xf]
    %v63 = vld [vmem:[#allocation5] sm:$0xf]
    %v64 = vld [vmem:[#allocation5 + $0x4] sm:$0xf]
    %v65 = vld [vmem:[#allocation5 + $0x8] sm:$0xf]
    %v66 = vld [vmem:[#allocation5 + $0xc] sm:$0xf]
    %v67 = vld [vmem:[#allocation5 + $0x10] sm:$0xf]
    %v68 = vld [vmem:[#allocation5 + $0x14] sm:$0xf]
    %v69 = vld [vmem:[#allocation5 + $0x18] sm:$0xf]
    %v70 = vld [vmem:[#allocation5 + $0x1c] sm:$0xf]
    %v71 = vld [vmem:[#allocation5 + $0x20] sm:$0xf]
    %v72 = vld [vmem:[#allocation5 + $0x24] sm:$0xf]
    %v73 = vld [vmem:[#allocation5 + $0x28] sm:$0xf]
    %v74 = vld [vmem:[#allocation5 + $0x2c] sm:$0xf]
    %v75 = vld [vmem:[#allocation5 + $0x30] sm:$0xf]
    %v76 = vld [vmem:[#allocation5 + $0x34] sm:$0xf]
    %v77 = vld [vmem:[#allocation5 + $0x38] sm:$0xf]
    %v78 = vld [vmem:[#allocation5 + $0x3c] sm:$0xf]
    %v79 = vld [vmem:[%s2] sm:$0x1]
    %v81 = vperm.slane %v79, 0
    %v99 = vunpack.c.l.b16 %v47
    %v100 = vunpack.c.l.b16 %v48
    %v101 = vunpack.c.l.b16 %v49
    %v102 = vunpack.c.l.b16 %v50
    %v103 = vunpack.c.l.b16 %v51
    %v104 = vunpack.c.l.b16 %v52
    %v105 = vunpack.c.l.b16 %v53
    %v106 = vunpack.c.l.b16 %v54
    %v107 = vunpack.c.l.b16 %v55
    %v108 = vunpack.c.l.b16 %v56
    %v109 = vunpack.c.l.b16 %v57
    %v110 = vunpack.c.l.b16 %v58
    %v111 = vunpack.c.l.b16 %v59
    %v112 = vunpack.c.l.b16 %v60
    %v113 = vunpack.c.l.b16 %v61
    %v114 = vunpack.c.l.b16 %v62
    %v115 = vpack.c.b16 %v100, %v99
    %v116 = vpack.c.b16 %v102, %v101
    %v117 = vpack.c.b16 %v104, %v103
    %v118 = vpack.c.b16 %v106, %v105
    %v119 = vpack.c.b16 %v108, %v107
    %v120 = vpack.c.b16 %v110, %v109
    %v121 = vpack.c.b16 %v112, %v111
    %v122 = vpack.c.b16 %v114, %v113
    %v147 = vunpack.c.l.b16 %v63
    %v148 = vunpack.c.l.b16 %v64
    %v149 = vunpack.c.l.b16 %v65
    %v150 = vunpack.c.l.b16 %v66
    %v151 = vunpack.c.l.b16 %v67
    %v152 = vunpack.c.l.b16 %v68
    %v153 = vunpack.c.l.b16 %v69
    %v154 = vunpack.c.l.b16 %v70
    %v155 = vunpack.c.l.b16 %v71
    %v156 = vunpack.c.l.b16 %v72
    %v157 = vunpack.c.l.b16 %v73
    %v158 = vunpack.c.l.b16 %v74
    %v159 = vunpack.c.l.b16 %v75
    %v160 = vunpack.c.l.b16 %v76
    %v161 = vunpack.c.l.b16 %v77
    %v162 = vunpack.c.l.b16 %v78
    %v163 = vpack.c.b16 %v148, %v147
    %v164 = vpack.c.b16 %v150, %v149
    %v165 = vpack.c.b16 %v152, %v151
    %v166 = vpack.c.b16 %v154, %v153
    %v167 = vpack.c.b16 %v156, %v155
    %v168 = vpack.c.b16 %v158, %v157
    %v169 = vpack.c.b16 %v160, %v159
    %v170 = vpack.c.b16 %v162, %v161
    %179 = vmatpush.bf16.msra.mxu0 %v170
    %180 = vmatpush.bf16.msra.mxu0 %v169
    %181 = vmatpush.bf16.msra.mxu0 %v168
    %182 = vmatpush.bf16.msra.mxu0 %v167
    %183 = vmatpush.bf16.msra.mxu0 %v166
    %184 = vmatpush.bf16.msra.mxu0 %v165
    %185 = vmatpush.bf16.msra.mxu0 %v164
    %186 = vmatpush.bf16.msra.mxu0 %v163
    %187 = vmatmul.bf16.gmra.mxu0 %v115
    %v188 = vpop.f32.mrf.mxu0
    %v189 = vadd.f32 %v81, %v188
    %v190 = vpop.f32.mrf.mxu0
    %v191 = vadd.f32 %v81, %v190
    %192 = vmatmul.bf16.gmra.mxu0 %v116
    %v193 = vpop.f32.mrf.mxu0
    %v194 = vadd.f32 %v81, %v193
    %v195 = vpop.f32.mrf.mxu0
    %v196 = vadd.f32 %v81, %v195
    %197 = vmatmul.bf16.gmra.mxu0 %v117
    %v198 = vpop.f32.mrf.mxu0
    %v199 = vadd.f32 %v81, %v198
    %v200 = vpop.f32.mrf.mxu0
    %v201 = vadd.f32 %v81, %v200
    %202 = vmatmul.bf16.gmra.mxu0 %v118
    %v203 = vpop.f32.mrf.mxu0
    %v204 = vadd.f32 %v81, %v203
    %v205 = vpop.f32.mrf.mxu0
    %v206 = vadd.f32 %v81, %v205
    %207 = vmatmul.bf16.gmra.mxu0 %v119
    %v208 = vpop.f32.mrf.mxu0
    %v209 = vadd.f32 %v81, %v208
    %v210 = vpop.f32.mrf.mxu0
    %v211 = vadd.f32 %v81, %v210
    %212 = vmatmul.bf16.gmra.mxu0 %v120
    %v213 = vpop.f32.mrf.mxu0
    %v214 = vadd.f32 %v81, %v213
    %v215 = vpop.f32.mrf.mxu0
    %v216 = vadd.f32 %v81, %v215
    %217 = vmatmul.bf16.gmra.mxu0 %v121
    %v218 = vpop.f32.mrf.mxu0
    %v219 = vadd.f32 %v81, %v218
    %v220 = vpop.f32.mrf.mxu0
    %v221 = vadd.f32 %v81, %v220
    %222 = vmatmul.bf16.gmra.mxu0 %v122
    %v223 = vpop.f32.mrf.mxu0
    %v224 = vadd.f32 %v81, %v223
    %v225 = vpop.f32.mrf.mxu0
    %v226 = vadd.f32 %v81, %v225
    %227 = vdwg.mxu0
    %228 = vst [vmem:[#allocation7] sm:$0xff] %v189
    %229 = vst [vmem:[#allocation7 + $0x8] sm:$0xff] %v191
    %230 = vst [vmem:[#allocation7 + $0x10] sm:$0xff] %v194
    %231 = vst [vmem:[#allocation7 + $0x18] sm:$0xff] %v196
    %232 = vst [vmem:[#allocation7 + $0x20] sm:$0xff] %v199
    %233 = vst [vmem:[#allocation7 + $0x28] sm:$0xff] %v201
    %234 = vst [vmem:[#allocation7 + $0x30] sm:$0xff] %v204
    %235 = vst [vmem:[#allocation7 + $0x38] sm:$0xff] %v206
    %236 = vst [vmem:[#allocation7 + $0x40] sm:$0xff] %v209
    %237 = vst [vmem:[#allocation7 + $0x48] sm:$0xff] %v211
    %238 = vst [vmem:[#allocation7 + $0x50] sm:$0xff] %v214
    %239 = vst [vmem:[#allocation7 + $0x58] sm:$0xff] %v216
    %240 = vst [vmem:[#allocation7 + $0x60] sm:$0xff] %v219
    %241 = vst [vmem:[#allocation7 + $0x68] sm:$0xff] %v221
    %242 = vst [vmem:[#allocation7 + $0x70] sm:$0xff] %v224
    %243 = vst [vmem:[#allocation7 + $0x78] sm:$0xff] %v226
    // Predicated region
    $region22: #{tpu_custom_call.1} parent=1 // pred_check
      _
    $region23: #{tpu_custom_call.1} parent=1 // pred_check_branch
      %245 = sbr.rel (0) target = $region25
    $region24: #{tpu_custom_call.1} parent=1 // pred_region
      %247 = vsyncadd [#allocation4], 0
      %s248 = sshll.u32 [#allocation7], 4
      %s249 = int_to_ptr.vmem [resolvable:$true] %s248
      %s250 = sshll.u32 %s3, 4
      %s251 = int_to_ptr.hbm [resolvable:$true] %s250
      %256 = dma.vmem_to_hbm [thread:$0]  %s249, 2048, %s251, [#allocation4], 128, 128, 8
    $region25: #{tpu_custom_call.1} parent=1 // pred_fallthru
      _
    // Predicated region
    $region26: #{tpu_custom_call.1} parent=1 // pred_check
      _
    $region27: #{tpu_custom_call.1} parent=1 // pred_check_branch
      %258 = sbr.rel (0) target = $region29
    $region28: #{tpu_custom_call.1} parent=1 // pred_region
      %260 = dma.done [#allocation4], 2048
    $region29: #{tpu_custom_call.1} parent=1 // pred_fallthru
      _
    %261 = vsyncpa [#allocation3], 1
    %262 = vsyncpa [#allocation6], 1
    %263 = vsyncpa [#allocation4], 1

</llo_original>
